<compile_context>
chip_gen: v7x
topology: tpu7x:2x2x1
jax: 0.10.0
libtpu: 0.0.40
codegen_flags: <defaults>
</compile_context>

<pallas_src>
import jax
import jax.numpy as jnp
from jax.experimental import pallas as pl
from jax.experimental.pallas import tpu as pltpu

_LANES = 128             # lane-dense last dim
_MAX_BLOCK_ROWS = 8192   # 8192 x 128 x 4 B = 4 MiB per f32 block buffer
_MIN_GRID_STEPS = 8      # target >= 8 grid steps when input spans > 1 block
_PALLAS_MIN_ELEMS = 16384  # below this, fused XLA elementwise is strictly faster


def _fused_reference(x, w1, b1, w2, b2):
    # conv1 (1x1, 1->1 ch) + ReLU, then conv2 (1x1, 1->1 ch)
    y = jnp.maximum(x * w1 + b1, 0.0)
    return y * w2 + b2


def _scheduler_net_kernel(params_ref, x_ref, o_ref):
    # params_ref: SMEM (4,) f32 = [w1, b1, w2, b2]
    w1 = params_ref[0]
    b1 = params_ref[1]
    w2 = params_ref[2]
    b2 = params_ref[3]
    x = x_ref[...]
    y = jnp.maximum(x * w1 + b1, 0.0)   # conv1 + ReLU
    o_ref[...] = y * w2 + b2            # conv2


def scheduler_test_net(x, w1, b1, w2, b2):
    """x: (N, 1, H, W) float32. Returns (N, 1, H, W) float32."""
    N, C, H, W = x.shape
    assert C == 1, "SchedulerTestNet uses Conv2d(1,1,1): single channel"
    orig_shape = x.shape
    orig_dtype = x.dtype
    total = N * C * H * W

    w1s = jnp.asarray(w1, jnp.float32).reshape(())
    b1s = jnp.asarray(b1, jnp.float32).reshape(())
    w2s = jnp.asarray(w2, jnp.float32).reshape(())
    b2s = jnp.asarray(b2, jnp.float32).reshape(())

    # Small-input fast path: pallas_call launch cost would dominate.
    if total < _PALLAS_MIN_ELEMS:
        out = _fused_reference(x.astype(jnp.float32), w1s, b1s, w2s, b2s)
        return out.astype(orig_dtype)

    # Lane-dense flattening; pad only to a whole number of 128-lane rows.
    rows = pl.cdiv(total, _LANES)
    padded_total = rows * _LANES
    needs_pad = padded_total != total

    xf = x.reshape(-1).astype(jnp.float32)
    if needs_pad:
        xf = jnp.pad(xf, (0, padded_total - total))
    x2d = xf.reshape(rows, _LANES)

    # Block size: sublane-aligned, capped at 4 MiB, and small enough that the
    # grid has >= _MIN_GRID_STEPS steps (pipelining + megacore sharding).
    block_rows = min(
        _MAX_BLOCK_ROWS,
        max(8, ((pl.cdiv(rows, _MIN_GRID_STEPS) + 7) // 8) * 8),
    )
    grid = (pl.cdiv(rows, block_rows),)  # last block may be partial

    params = jnp.stack([w1s, b1s, w2s, b2s])

    out2d = pl.pallas_call(
        _scheduler_net_kernel,
        out_shape=jax.ShapeDtypeStruct((rows, _LANES), jnp.float32),
        grid=grid,
        in_specs=[
            pl.BlockSpec(memory_space=pltpu.MemorySpace.SMEM),      # scalar params
            pl.BlockSpec((block_rows, _LANES), lambda i: (i, 0)),   # input tile
        ],
        out_specs=pl.BlockSpec((block_rows, _LANES), lambda i: (i, 0)),
        compiler_params=pltpu.CompilerParams(
            dimension_semantics=("parallel",),
            vmem_limit_bytes=48 << 20,
        ),
    )(params, x2d)

    if needs_pad:
        out = out2d.reshape(-1)[:total].reshape(orig_shape)
    else:
        out = out2d.reshape(orig_shape)
    return out.astype(orig_dtype)


if __name__ == "__main__":
    key = jax.random.PRNGKey(0)
    kx0, kx1, kx2, k1, k2, k3, k4 = jax.random.split(key, 7)

    # Conv2d(1,1,1) parameters: weight (1,1,1,1), bias (1,)
    w1 = jax.random.normal(k1, (1, 1, 1, 1), dtype=jnp.float32) * 0.5
    b1 = jax.random.normal(k2, (1,), dtype=jnp.float32) * 0.1
    w2 = jax.random.normal(k3, (1, 1, 1, 1), dtype=jnp.float32) * 0.5
    b2 = jax.random.normal(k4, (1,), dtype=jnp.float32) * 0.1

    w1s = w1.reshape(())
    b1s = b1.reshape(())
    w2s = w2.reshape(())
    b2s = b2.reshape(())

    # 1) Module-native tiny shape -> small-input fast path.
    x_tiny = jax.random.normal(kx0, (2, 1, 16, 16), dtype=jnp.float32)
    out_tiny = jax.block_until_ready(scheduler_test_net(x_tiny, w1, b1, w2, b2))
    ref_tiny = _fused_reference(x_tiny, w1s, b1s, w2s, b2s)
    assert out_tiny.shape == x_tiny.shape
    assert jnp.allclose(out_tiny, ref_tiny, atol=1e-6), "tiny-shape mismatch"

    # 2) Pallas path, total divisible by 128 (no padding, no trim).
    x_med = jax.random.normal(kx1, (2, 1, 128, 128), dtype=jnp.float32)
    out_med = jax.block_until_ready(scheduler_test_net(x_med, w1, b1, w2, b2))
    ref_med = _fused_reference(x_med, w1s, b1s, w2s, b2s)
    assert out_med.shape == x_med.shape
    assert jnp.allclose(out_med, ref_med, atol=1e-6), "pallas-path mismatch"

    # 3) Pallas path with a ragged total (exercises 128-lane padding + trim).
    x_rag = jax.random.normal(kx2, (3, 1, 100, 100), dtype=jnp.float32)
    out_rag = jax.block_until_ready(scheduler_test_net(x_rag, w1, b1, w2, b2))
    ref_rag = _fused_reference(x_rag, w1s, b1s, w2s, b2s)
    assert out_rag.shape == x_rag.shape
    assert jnp.allclose(out_rag, ref_rag, atol=1e-6), "ragged-path mismatch"

    print("KERNEL_OK")
</pallas_src>

<mosaic_0001>
module attributes {stable_mosaic.version = 11 : i64} {
  func.func @_scheduler_net_kernel(%arg0: i32, %arg1: memref<4xf32, #tpu.memory_space<smem>>, %arg2: memref<32x128xf32, #tpu.memory_space<vmem>>, %arg3: memref<32x128xf32, #tpu.memory_space<vmem>>) attributes {dimension_semantics = [#tpu.dimension_semantics<parallel>], iteration_bounds = array<i64: 8>, scalar_prefetch = 0 : i64, scratch_operands = 0 : i64, tpu.core_type = #tpu.core_type<tc>, window_params = [{transform_indices = @transform_0, window_bounds = array<i64: 4>}, {transform_indices = @transform_1, window_bounds = array<i64: 32, 128>}, {transform_indices = @transform_2, window_bounds = array<i64: 32, 128>}]} {
    %c0 = arith.constant 0 : index
    %0 = memref.load %arg1[%c0] : memref<4xf32, #tpu.memory_space<smem>>
    %c1 = arith.constant 1 : index
    %1 = memref.load %arg1[%c1] : memref<4xf32, #tpu.memory_space<smem>>
    %c2 = arith.constant 2 : index
    %2 = memref.load %arg1[%c2] : memref<4xf32, #tpu.memory_space<smem>>
    %c3 = arith.constant 3 : index
    %3 = memref.load %arg1[%c3] : memref<4xf32, #tpu.memory_space<smem>>
    %c0_0 = arith.constant 0 : index
    %c0_1 = arith.constant 0 : index
    %4 = vector.load %arg2[%c0_0, %c0_1] : memref<32x128xf32, #tpu.memory_space<vmem>>, vector<32x128xf32>
    %5 = vector.broadcast %0 : f32 to vector<32x128xf32>
    %6 = arith.mulf %4, %5 : vector<32x128xf32>
    %7 = vector.broadcast %1 : f32 to vector<32x128xf32>
    %8 = arith.addf %6, %7 : vector<32x128xf32>
    %cst = arith.constant 0.000000e+00 : f32
    %9 = vector.broadcast %cst : f32 to vector<32x128xf32>
    %10 = arith.maximumf %8, %9 : vector<32x128xf32>
    %11 = vector.broadcast %2 : f32 to vector<32x128xf32>
    %12 = arith.mulf %10, %11 : vector<32x128xf32>
    %13 = vector.broadcast %3 : f32 to vector<32x128xf32>
    %14 = arith.addf %12, %13 : vector<32x128xf32>
    %c0_2 = arith.constant 0 : index
    %c0_3 = arith.constant 0 : index
    %15 = vector.load %arg3[%c0_2, %c0_3] : memref<32x128xf32, #tpu.memory_space<vmem>>, vector<32x128xf32>
    tpu.vector_store %arg3[%c0_2, %c0_3], %14 {strides = array<i32>} : memref<32x128xf32, #tpu.memory_space<vmem>>, vector<32x128xf32>,
    return
  }
  func.func @transform_0(%arg0: i32) -> i32 {
    %c0_i32 = arith.constant 0 : i32
    %c0_i32_0 = arith.constant 0 : i32
    return %c0_i32 : i32
  }
  func.func @transform_1(%arg0: i32) -> (i32, i32) {
    %c0_i32 = arith.constant 0 : i32
    %c0_i32_0 = arith.constant 0 : i32
    return %arg0, %c0_i32 : i32, i32
  }
  func.func @transform_2(%arg0: i32) -> (i32, i32) {
    %c0_i32 = arith.constant 0 : i32
    %c0_i32_0 = arith.constant 0 : i32
    return %arg0, %c0_i32 : i32, i32
  }
}

</mosaic_0001>

<llo_original>
// kernel: tpu_custom_call.1
$region0: #{tpu_custom_call.1}
  #allocation0 [shape = 'u32[]', space=smem, size = 0x4, offset = 0x4, fixed_abs, tag = 'smem constant byte address 0x4 - core index']
  #allocation1 [shape = 'u32[144,128]{1,0:T(1,128)}', space=vmem, size = 0x12000, scoped, tag = 'internal scratch']
  %s0 = inlined_call_operand.hbm [shape: f32[4], index: 0, kind: input, shape index: {}]
  %s1 = inlined_call_operand.hbm [shape: f32[256,128], index: 1, kind: input, shape index: {}]
  %s2 = inlined_call_operand.hbm [shape: f32[256,128], index: 2, kind: output, shape index: {}]
  %s3 = sld [smem:[#allocation0]]
  $region49: #{tpu_custom_call.1} parent=0
    _
  %s5 = ssub.s32 1, %s3
  %s6 = scalar_select 0, %s5, %s3
  $region1: #{tpu_custom_call.1} parent=0
    #allocation2 [shape = 'u8[512]{0}', space=smem, size = 0x200, scoped, tag = 'input window, operand 0, single buffered']
    #allocation3 [shape = 's32[2]{0}', space=sflag, size = 0x8, scoped, tag = 'scoped memory for tpu_custom_call.1']
    #allocation4 [shape = 's32[2]{0}', space=sflag, size = 0x8, scoped, tag = 'scoped memory for tpu_custom_call.1']
    #allocation5 [shape = 's32[2]{0}', space=sflag, size = 0x8, scoped, tag = 'scoped memory for tpu_custom_call.1']
    #allocation6 [shape = 'u8[32768]{0}', space=vmem, size = 0x8000, scoped, tag = 'input window, operand 1']
    #allocation7 [shape = 'u8[32768]{0}', space=vmem, size = 0x8000, scoped, tag = 'output window, operand 0']
    %7 = vsyncpa [#allocation5], 0
    %8 = vsyncpa [#allocation3], 0
    %s9 = scalar_lea.sflag [#allocation3], 1
    %10 = vsyncpa %s9, 0
    %11 = vsyncpa [#allocation4], 0
    %s12 = scalar_lea.sflag [#allocation4], 1
    %13 = vsyncpa %s12, 0
    loop: start=0, step=1, limit=10
    $region2: #{tpu_custom_call.1} parent=1 // loop_pre_header
      _
    $region3: #{tpu_custom_call.1} parent=1 // loop_header
      %s15 = sphi 0, %s19
      %p16 = scmp.ge.s32.totalorder %s15, 10
      %s23 = sphi 0, %s23
      %s25 = sphi 0, %s23
      %s26 = sphi 0, %s25
      %s40 = sphi 0, %s26
      %s46 = sphi 0, %s48
      %s49 = sphi 0, %s46
      %s50 = sphi 0, %s49
      %s66 = sphi 0, %s50
      %s72 = sphi 0, %s74
      %s75 = sphi 0, %s72
      %s76 = sphi 0, %s75
      %s92 = sphi 0, %s76
    $region4: #{tpu_custom_call.1} parent=1 // loop_header_branch
      %18 = sbr.rel (%p16) target = $region8
    $region5: #{tpu_custom_call.1} parent=1 // loop_body
      %s20 = ssub.s32 %s15, 1
      %s21 = ssub.s32 %s15, 2
      %s22 = sadd.s32 %s15, 1
      %s24 = sadd.s32 %s23, 1
      %p27 = scmp.eq.s32.totalorder %s15, 7
      %p28 = scmp.ne.s32.totalorder %s23, %s25
      %p29 = scmp.eq.s32.totalorder %s15, 0
      %p30 = por %p28, %p29
      %p31 = scmp.ne.s32.totalorder %s23, %s25
      %p32 = scmp.eq.s32.totalorder %s20, 7
      %p33 = por %p31, %p32
      %p34 = scmp.ne.s32.totalorder %s25, %s26
      %p35 = scmp.eq.s32.totalorder %s20, 0
      %p36 = por %p34, %p35
      %p37 = scmp.ne.s32.totalorder %s25, %s26
      %p38 = scmp.eq.s32.totalorder %s21, 7
      %p39 = por %p37, %p38
      %p41 = scmp.ne.s32.totalorder %s26, %s40
      %p42 = scmp.eq.s32.totalorder %s21, 0
      %p43 = por %p41, %p42
      %s44 = ssub.s32 %s15, %s22
      %p45 = scmp.eq.s32.totalorder %s44, 0
      %s47 = sadd.s32 %s46, 1
      %s48 = scalar_select %p45, %s46, %s47
      %p51 = pneg %p45
      %p52 = scmp.eq.s32.totalorder %s15, 7
      %p53 = por %p51, %p52
      %p54 = scmp.ne.s32.totalorder %s46, %s49
      %p55 = scmp.eq.s32.totalorder %s15, 0
      %p56 = por %p54, %p55
      %p57 = scmp.ne.s32.totalorder %s46, %s49
      %p58 = scmp.eq.s32.totalorder %s20, 7
      %p59 = por %p57, %p58
      %p60 = scmp.ne.s32.totalorder %s49, %s50
      %p61 = scmp.eq.s32.totalorder %s20, 0
      %p62 = por %p60, %p61
      %p63 = scmp.ne.s32.totalorder %s49, %s50
      %p64 = scmp.eq.s32.totalorder %s21, 7
      %p65 = por %p63, %p64
      %p67 = scmp.ne.s32.totalorder %s50, %s66
      %p68 = scmp.eq.s32.totalorder %s21, 0
      %p69 = por %p67, %p68
      %s70 = ssub.s32 %s15, %s22
      %p71 = scmp.eq.s32.totalorder %s70, 0
      %s73 = sadd.s32 %s72, 1
      %s74 = scalar_select %p71, %s72, %s73
      %p77 = pneg %p71
      %p78 = scmp.eq.s32.totalorder %s15, 7
      %p79 = por %p77, %p78
      %p80 = scmp.ne.s32.totalorder %s72, %s75
      %p81 = scmp.eq.s32.totalorder %s15, 0
      %p82 = por %p80, %p81
      %p83 = scmp.ne.s32.totalorder %s72, %s75
      %p84 = scmp.eq.s32.totalorder %s20, 7
      %p85 = por %p83, %p84
      %p86 = scmp.ne.s32.totalorder %s75, %s76
      %p87 = scmp.eq.s32.totalorder %s20, 0
      %p88 = por %p86, %p87
      %p89 = scmp.ne.s32.totalorder %s75, %s76
      %p90 = scmp.eq.s32.totalorder %s21, 7
      %p91 = por %p89, %p90
      %p93 = scmp.ne.s32.totalorder %s76, %s92
      %p94 = scmp.eq.s32.totalorder %s21, 0
      %p95 = por %p93, %p94
      %p96 = scmp.le.s32.totalorder 1, %s15
      %p97 = scmp.lt.s32.totalorder %s15, 9
      %p98 = pnand %p96, %p97
      %p99 = pneg %p98
      // Predicated region
      $region9: #{tpu_custom_call.1} parent=5 // pred_check
        _
      $region10: #{tpu_custom_call.1} parent=5 // pred_check_branch
        %101 = sbr.rel (%p98) target = $region12
      $region11: #{tpu_custom_call.1} parent=5 // pred_region
        %s102 = ssub.s32 %s15, 1
        // Predicated region
        $region13: #{tpu_custom_call.1} parent=11 // pred_check
          %p103 = pneg %p36
        $region14: #{tpu_custom_call.1} parent=11 // pred_check_branch
          %105 = sbr.rel (%p103) target = $region16
        $region15: #{tpu_custom_call.1} parent=11 // pred_region
          %s107 = ssub.s32 16, 16
          %108 = vsyncadd [#allocation5], %s107
          %111 = dma.hbm_to_smem %s0, 16, [#allocation2], [#allocation5]
        $region16: #{tpu_custom_call.1} parent=11 // pred_fallthru
          _
      $region12: #{tpu_custom_call.1} parent=5 // pred_fallthru
        _
      %p112 = scmp.lt.s32.totalorder %s15, 8
      // Predicated region
      $region17: #{tpu_custom_call.1} parent=5 // pred_check
        %p113 = pneg %p112
      $region18: #{tpu_custom_call.1} parent=5 // pred_check_branch
        %115 = sbr.rel (%p113) target = $region20
      $region19: #{tpu_custom_call.1} parent=5 // pred_region
        // Predicated region
        $region21: #{tpu_custom_call.1} parent=19 // pred_check
          %p116 = pneg %p56
        $region22: #{tpu_custom_call.1} parent=19 // pred_check_branch
          %118 = sbr.rel (%p116) target = $region24
        $region23: #{tpu_custom_call.1} parent=19 // pred_region
          %s119 = sand.u32 %s46, 1
          %s120 = scalar_lea.sflag [#allocation3], %s119
          %s121 = sand.u32 %s46, 1
          %s122 = smul.addr %s121, 32
          %s123 = scalar_lea.vmem [#allocation6], %s122
          %s124 = smul.u32 4, %s15
          %s126 = ssub.s32 512, 512
          %127 = vsyncadd %s120, %s126
          %s128 = smul.addr %s124, 128
          %s129 = scalar_lea.hbm %s1, %s128
          %s130 = sshll.u32 %s123, 4
          %s131 = int_to_ptr.vmem [resolvable:$true] %s130
          %136 = dma.hbm_to_vmem [thread:$0]  %s129, 512, %s131, %s120, 128, 128, 8
        $region24: #{tpu_custom_call.1} parent=19 // pred_fallthru
          _
      $region20: #{tpu_custom_call.1} parent=5 // pred_fallthru
        _
      %p137 = scmp.le.s32.totalorder 1, %s15
      %p138 = scmp.lt.s32.totalorder %s15, 9
      %p139 = pnand %p137, %p138
      %p140 = pneg %p139
      // Predicated region
      $region25: #{tpu_custom_call.1} parent=5 // pred_check
        _
      $region26: #{tpu_custom_call.1} parent=5 // pred_check_branch
        %142 = sbr.rel (%p139) target = $region28
      $region27: #{tpu_custom_call.1} parent=5 // pred_region
        %s143 = ssub.s32 %s15, 1
        // Predicated region
        $region29: #{tpu_custom_call.1} parent=27 // pred_check
          %p144 = pneg %p36
        $region30: #{tpu_custom_call.1} parent=27 // pred_check_branch
          %146 = sbr.rel (%p144) target = $region32
        $region31: #{tpu_custom_call.1} parent=27 // pred_region
          %147 = dma.done [#allocation5], 16
        $region32: #{tpu_custom_call.1} parent=27 // pred_fallthru
          _
        %s148 = sand.u32 %s49, 1
        %s149 = scalar_lea.sflag [#allocation3], %s148
        %s150 = sand.u32 %s49, 1
        %s151 = smul.addr %s150, 32
        %s152 = scalar_lea.vmem [#allocation6], %s151
        // Predicated region
        $region33: #{tpu_custom_call.1} parent=27 // pred_check
          %p153 = pneg %p62
        $region34: #{tpu_custom_call.1} parent=27 // pred_check_branch
          %155 = sbr.rel (%p153) target = $region36
        $region35: #{tpu_custom_call.1} parent=27 // pred_region
          %156 = dma.done %s149, 512
        $region36: #{tpu_custom_call.1} parent=27 // pred_fallthru
          _
        %157 = sfence
        %p158 = pneg %p36
        %p159 = pneg %p33
        %s160 = sand.u32 %s49, 1
        %s161 = scalar_lea.sflag [#allocation3], %s160
        %s162 = sand.u32 %s49, 1
        %s163 = smul.addr %s162, 32
        %s164 = scalar_lea.vmem [#allocation6], %s163
        %p165 = pneg %p62
        %p166 = pneg %p59
        %p167 = pneg %p88
        %p168 = pneg %p85
        %s169 = sand.u32 %s75, 1
        %s170 = scalar_lea.sflag [#allocation4], %s169
        %s171 = sand.u32 %s75, 1
        %s172 = smul.addr %s171, 32
        %s173 = scalar_lea.vmem [#allocation7], %s172
        %s174 = smul.u32 4, %s20
        %s175 = smul.u32 4, %s20
        %s176 = sld [smem:[#allocation2]]
        %s177 = sld [smem:[#allocation2 + $0x1]]
        %s178 = sld [smem:[#allocation2 + $0x2]]
        %s179 = sld [smem:[#allocation2 + $0x3]]
        %v180 = vld [vmem:[%s152] sm:$0xff]
        %v181 = vld [vmem:[%s152 + $0x8] sm:$0xff]
        %v182 = vld [vmem:[%s152 + $0x10] sm:$0xff]
        %v183 = vld [vmem:[%s152 + $0x18] sm:$0xff]
        %v184 = vstv %s176
        %v185 = vmul.f32 %v180, %v184
        %v186 = vmul.f32 %v181, %v184
        %v187 = vmul.f32 %v182, %v184
        %v188 = vmul.f32 %v183, %v184
        %v189 = vstv %s177
        %v190 = vadd.f32 %v185, %v189
        %v191 = vadd.f32 %v186, %v189
        %v192 = vadd.f32 %v187, %v189
        %v193 = vadd.f32 %v188, %v189
        %v194 = vmax.f32 %v190, 0.0
        %v195 = vmax.f32 %v191, 0.0
        %v196 = vmax.f32 %v192, 0.0
        %v197 = vmax.f32 %v193, 0.0
        %v198 = vstv %s178
        %v199 = vmul.f32 %v194, %v198
        %v200 = vmul.f32 %v195, %v198
        %v201 = vmul.f32 %v196, %v198
        %v202 = vmul.f32 %v197, %v198
        %v203 = vstv %s179
        %v204 = vadd.f32 %v199, %v203
        %v205 = vadd.f32 %v200, %v203
        %v206 = vadd.f32 %v201, %v203
        %v207 = vadd.f32 %v202, %v203
        %208 = vst [vmem:[%s173] sm:$0xff] %v204
        %209 = vst [vmem:[%s173 + $0x8] sm:$0xff] %v205
        %210 = vst [vmem:[%s173 + $0x10] sm:$0xff] %v206
        %211 = vst [vmem:[%s173 + $0x18] sm:$0xff] %v207
        %s212 = sand.u32 %s75, 1
        %s213 = scalar_lea.sflag [#allocation4], %s212
        %s214 = sand.u32 %s75, 1
        %s215 = smul.addr %s214, 32
        %s216 = scalar_lea.vmem [#allocation7], %s215
        // Predicated region
        $region37: #{tpu_custom_call.1} parent=27 // pred_check
          %p217 = pneg %p85
        $region38: #{tpu_custom_call.1} parent=27 // pred_check_branch
          %219 = sbr.rel (%p217) target = $region40
        $region39: #{tpu_custom_call.1} parent=27 // pred_region
          %s220 = smul.u32 4, %s20
          %s222 = ssub.s32 512, 512
          %223 = vsyncadd %s213, %s222
          %s224 = smul.addr %s220, 128
          %s225 = scalar_lea.hbm %s2, %s224
          %s226 = sshll.u32 %s216, 4
          %s227 = int_to_ptr.vmem [resolvable:$true] %s226
          %232 = dma.vmem_to_hbm [thread:$0]  %s227, 512, %s225, %s213, 128, 128, 8
        $region40: #{tpu_custom_call.1} parent=27 // pred_fallthru
          _
      $region28: #{tpu_custom_call.1} parent=5 // pred_fallthru
        _
      %p233 = scmp.le.s32.totalorder 2, %s15
      // Predicated region
      $region41: #{tpu_custom_call.1} parent=5 // pred_check
        %p234 = pneg %p233
      $region42: #{tpu_custom_call.1} parent=5 // pred_check_branch
        %236 = sbr.rel (%p234) target = $region44
      $region43: #{tpu_custom_call.1} parent=5 // pred_region
        %s237 = ssub.s32 %s15, 2
        // Predicated region
        $region45: #{tpu_custom_call.1} parent=43 // pred_check
          %p238 = pneg %p91
        $region46: #{tpu_custom_call.1} parent=43 // pred_check_branch
          %240 = sbr.rel (%p238) target = $region48
        $region47: #{tpu_custom_call.1} parent=43 // pred_region
          %s241 = sand.u32 %s76, 1
          %s242 = scalar_lea.sflag [#allocation4], %s241
          %s243 = sand.u32 %s76, 1
          %s244 = smul.addr %s243, 32
          %s245 = scalar_lea.vmem [#allocation7], %s244
          %246 = dma.done %s242, 512
        $region48: #{tpu_custom_call.1} parent=43 // pred_fallthru
          _
      $region44: #{tpu_custom_call.1} parent=5 // pred_fallthru
        _
    $region6: #{tpu_custom_call.1} parent=1 // loop_footer
      %s19 = sadd.s32 1, %s15
    $region7: #{tpu_custom_call.1} parent=1 // loop_footer_branch
      %14 = sbr.rel target = $region3
    $region8: #{tpu_custom_call.1} parent=1 // loop_exit
      _
    %247 = vsyncpa [#allocation3], 1
    %s248 = scalar_lea.sflag [#allocation3], 1
    %249 = vsyncpa %s248, 1
    %250 = vsyncpa [#allocation4], 1
    %s251 = scalar_lea.sflag [#allocation4], 1
    %252 = vsyncpa %s251, 1
    %253 = vsyncpa [#allocation5], 1
    %s254 = scalar_lea.sflag [#allocation5], 1
    %255 = vsyncpa %s254, 1

</llo_original>
